<compile_context>
chip_gen: v7x
topology: tpu7x:2x2x1
jax: 0.10.0
libtpu: 0.0.40
codegen_flags: <defaults>
</compile_context>

<pallas_src>
import functools

import jax
import jax.numpy as jnp
from jax.experimental import pallas as pl
from jax.experimental.pallas import tpu as pltpu


# Accumulator row layout (8 sublanes x C lanes).
(_ROW_POS, _ROW_NEG, _ROW_YP_POS, _ROW_YP2_POS,
 _ROW_YP_NEG, _ROW_YP2_NEG, _ROW_CONF, _ROW_PAD) = range(8)


def _accum_kernel(y_pred_ref, y_true_ref, acc_ref, *,
                  true_batch, tiles_per_part, masked):
    """Accumulate per-class sums of one (TB, C) batch tile into acc_ref (8, C)."""
    j = pl.program_id(1)

    @pl.when(j == 0)
    def _():
        acc_ref[...] = jnp.zeros_like(acc_ref)

    yp = y_pred_ref[...]                       # (TB, C) float32 logits
    yt = y_true_ref[...]                       # (TB, C) float32 labels
    tb, c = yp.shape

    # Exact float equality, faithful to the PyTorch source: labels that are not
    # exactly 0.0 / 1.0 contribute to neither mask (so we keep both compares
    # instead of neg = 1 - pos).
    pos = (yt == 1.0).astype(jnp.float32)
    neg = (yt == 0.0).astype(jnp.float32)

    # Row-wise softmax over classes (MDCA confidence).  The normalization is
    # only O(TB) divides per tile, so we keep the exact divide (no approx
    # reciprocal) to stay bit-close to the reference.
    m = jnp.max(yp, axis=1, keepdims=True)
    e = jnp.exp(yp - m)
    denom = jnp.sum(e, axis=1, keepdims=True)
    sm = e / denom                             # (TB, C)

    if masked:
        # Batch was zero-padded up to a multiple of the tile size: mask the
        # padded rows out of every accumulator.
        i = pl.program_id(0)
        row0 = (i * tiles_per_part + j) * tb
        rows = row0 + jax.lax.broadcasted_iota(jnp.int32, (tb, 1), 0)
        valid = (rows < true_batch).astype(jnp.float32)     # (TB, 1)
        pos = pos * valid
        neg = neg * valid
        sm = sm * valid

    yp_pos = yp * pos
    yp_neg = yp * neg

    update = jnp.concatenate(
        [
            jnp.sum(pos, axis=0, keepdims=True),          # _ROW_POS
            jnp.sum(neg, axis=0, keepdims=True),          # _ROW_NEG
            jnp.sum(yp_pos, axis=0, keepdims=True),       # _ROW_YP_POS
            jnp.sum(yp * yp_pos, axis=0, keepdims=True),  # _ROW_YP2_POS
            jnp.sum(yp_neg, axis=0, keepdims=True),       # _ROW_YP_NEG
            jnp.sum(yp * yp_neg, axis=0, keepdims=True),  # _ROW_YP2_NEG
            jnp.sum(sm, axis=0, keepdims=True),           # _ROW_CONF
            jnp.zeros((1, c), jnp.float32),               # _ROW_PAD
        ],
        axis=0,
    )                                                      # (8, C)
    acc_ref[...] += update


def _round_up(x, m):
    return (x + m - 1) // m * m


def aucm_multilabel_mdca(y_pred, y_true, a, b, alpha, beta=1.0, *,
                         block_rows=512, num_parallel=None):
    """Pallas forward of AUCM_MultiLabel_MDCA_V1 (auto=True). Returns scalar loss."""
    y_pred = jnp.asarray(y_pred, jnp.float32)
    y_true = jnp.asarray(y_true, jnp.float32)
    B, C = y_pred.shape
    a = jnp.asarray(a, jnp.float32).reshape(C)
    b = jnp.asarray(b, jnp.float32).reshape(C)
    alpha = jnp.asarray(alpha, jnp.float32).reshape(C)

    # --- batch tile size: keep 2 inputs x 2 pipeline buffers well under the
    # scoped-VMEM default on v5e/v6e/v7x (budget ~16 MiB of inputs). ---
    vmem_budget = 16 * 1024 * 1024
    tb_cap = max(8, vmem_budget // (2 * 2 * 4 * C))
    tb = min(int(block_rows), tb_cap, _round_up(B, 8))
    tb = max(8, _round_up(tb, 8))
    n_tiles = _round_up(B, tb) // tb

    # --- split tiles across the parallel grid axis (v7x dual TensorCore). ---
    if num_parallel is None:
        n_parts = 2 if n_tiles >= 2 else 1
    else:
        n_parts = max(1, min(int(num_parallel), n_tiles))
    tiles_per_part = -(-n_tiles // n_parts)
    b_pad = n_parts * tiles_per_part * tb
    if b_pad != B:
        y_pred = jnp.pad(y_pred, ((0, b_pad - B), (0, 0)))
        y_true = jnp.pad(y_true, ((0, b_pad - B), (0, 0)))

    kernel = functools.partial(
        _accum_kernel,
        true_batch=B,
        tiles_per_part=tiles_per_part,
        masked=(b_pad != B),
    )
    cost = pl.CostEstimate(
        flops=int(20 * b_pad * C),
        transcendentals=int(b_pad * C),
        bytes_accessed=int(2 * b_pad * C * 4 + n_parts * 8 * C * 4),
    )
    partials = pl.pallas_call(
        kernel,
        out_shape=jax.ShapeDtypeStruct((n_parts * 8, C), jnp.float32),
        grid_spec=pltpu.PrefetchScalarGridSpec(
            num_scalar_prefetch=0,
            grid=(n_parts, tiles_per_part),
            in_specs=[
                pl.BlockSpec((tb, C), lambda i, j: (i * tiles_per_part + j, 0)),
                pl.BlockSpec((tb, C), lambda i, j: (i * tiles_per_part + j, 0)),
            ],
            out_specs=pl.BlockSpec((8, C), lambda i, j: (i, 0)),
        ),
        compiler_params=pltpu.CompilerParams(
            dimension_semantics=("parallel", "arbitrary")),
        cost_estimate=cost,
    )(y_pred, y_true)

    # --- tiny O(C) epilogue on the accumulated per-class sums ---
    sums = jnp.sum(partials.reshape(n_parts, 8, C), axis=0)
    s_pos = sums[_ROW_POS]
    s_neg = sums[_ROW_NEG]
    s_yp_pos = sums[_ROW_YP_POS]
    s_yp2_pos = sums[_ROW_YP2_POS]
    s_yp_neg = sums[_ROW_YP_NEG]
    s_yp2_neg = sums[_ROW_YP2_NEG]
    s_conf = sums[_ROW_CONF]

    inv_b = jnp.float32(1.0 / B)
    p = s_pos * inv_b                          # auto=True imbalance ratio per class
    one_m_p = 1.0 - p
    # mean((yp - a)^2 * pos) expanded so a/b never touch the (B, C) stream.
    mean_pos = (s_yp2_pos - 2.0 * a * s_yp_pos + a * a * s_pos) * inv_b
    mean_neg = (s_yp2_neg - 2.0 * b * s_yp_neg + b * b * s_neg) * inv_b
    inner = (p * s_yp_neg - one_m_p * s_yp_pos) * inv_b
    per_class = (one_m_p * mean_pos + p * mean_neg
                 + 2.0 * alpha * (p * one_m_p + inner)
                 - p * one_m_p * alpha * alpha)
    total_loss = jnp.sum(per_class)

    # MDCA term.  The PyTorch loop compares the WHOLE (B, C) label matrix to
    # class index c; with {0,1} multilabel targets only c=0 / c=1 ever match,
    # and those counts are exactly sum(neg) / sum(pos).
    # TODO(synk): counts for c >= 2 are assumed zero (strictly binary targets).
    inv_bc = jnp.float32(1.0 / (B * C))
    avg_conf = s_conf * inv_b
    class_ids = jnp.arange(C, dtype=jnp.float32)
    avg_count = jnp.where(class_ids == 0.0, jnp.sum(s_neg) * inv_bc,
                jnp.where(class_ids == 1.0, jnp.sum(s_pos) * inv_bc, 0.0))
    loss_mdca = jnp.sum(jnp.abs(avg_conf - avg_count)) / C
    return total_loss + jnp.float32(beta) * loss_mdca


def _reference(y_pred, y_true, a, b, alpha, beta):
    """Pure-JAX mirror of the PyTorch forward (for correctness checking)."""
    B, C = y_pred.shape
    total = 0.0
    for idx in range(C):
        yp_i = y_pred[:, idx].reshape(-1, 1)
        yt_i = y_true[:, idx].reshape(-1, 1)
        p = jnp.sum((yt_i == 1).astype(jnp.float32)) / B
        pos = (yt_i == 1).astype(jnp.float32)
        neg = (yt_i == 0).astype(jnp.float32)
        loss = ((1 - p) * jnp.mean((yp_i - a[idx]) ** 2 * pos)
                + p * jnp.mean((yp_i - b[idx]) ** 2 * neg)
                + 2 * alpha[idx] * (p * (1 - p)
                                    + jnp.mean(p * yp_i * neg - (1 - p) * yp_i * pos))
                - p * (1 - p) * alpha[idx] ** 2)
        total = total + loss
    sm = jax.nn.softmax(y_pred, axis=1)
    loss_mdca = 0.0
    for c in range(C):
        avg_count = jnp.mean((y_true == c).astype(jnp.float32))
        avg_conf = jnp.mean(sm[:, c])
        loss_mdca = loss_mdca + jnp.abs(avg_conf - avg_count)
    loss_mdca = loss_mdca / C
    return total + beta * loss_mdca


if __name__ == "__main__":
    key = jax.random.PRNGKey(0)
    k1, k2, k3, k4, k5, k6, k7 = jax.random.split(key, 7)

    # Case 1: module defaults (num_classes=10, a/b/alpha initialised to zeros).
    B, C = 8, 10
    y_pred = jax.random.normal(k1, (B, C), dtype=jnp.float32)
    y_true = (jax.random.uniform(k2, (B, C)) > 0.5).astype(jnp.float32)
    a = jnp.zeros((C,), jnp.float32)
    b = jnp.zeros((C,), jnp.float32)
    alpha = jnp.zeros((C,), jnp.float32)
    loss = jax.block_until_ready(
        aucm_multilabel_mdca(y_pred, y_true, a, b, alpha, beta=1.0))
    ref = _reference(y_pred, y_true, a, b, alpha, 1.0)
    assert jnp.allclose(loss, ref, atol=1e-5, rtol=1e-5), (loss, ref)

    # Case 2: non-zero params, batch that needs padding/masking, and both grid
    # partitions active (block_rows=8 -> 5 tiles split over 2 partitions).
    B2 = 40
    y_pred2 = jax.random.normal(k3, (B2, C), dtype=jnp.float32)
    y_true2 = (jax.random.uniform(k4, (B2, C)) > 0.3).astype(jnp.float32)
    a2 = 0.1 * jax.random.normal(k5, (C,), dtype=jnp.float32)
    b2 = 0.1 * jax.random.normal(k6, (C,), dtype=jnp.float32)
    alpha2 = 0.1 * jax.random.normal(k7, (C,), dtype=jnp.float32)
    loss2 = jax.block_until_ready(
        aucm_multilabel_mdca(y_pred2, y_true2, a2, b2, alpha2, beta=0.7,
                             block_rows=8))
    ref2 = _reference(y_pred2, y_true2, a2, b2, alpha2, 0.7)
    assert jnp.allclose(loss2, ref2, atol=1e-5, rtol=1e-5), (loss2, ref2)

    print("KERNEL_OK")
</pallas_src>

<mosaic_0001>
module attributes {stable_mosaic.version = 11 : i64} {
  func.func @_accum_kernel(%arg0: i32, %arg1: i32, %arg2: memref<8x10xf32, #tpu.memory_space<vmem>>, %arg3: memref<8x10xf32, #tpu.memory_space<vmem>>, %arg4: memref<8x10xf32, #tpu.memory_space<vmem>>) attributes {dimension_semantics = [#tpu.dimension_semantics<parallel>, #tpu.dimension_semantics<arbitrary>], iteration_bounds = array<i64: 1, 1>, scalar_prefetch = 0 : i64, scratch_operands = 0 : i64, tpu.core_type = #tpu.core_type<tc>, window_params = [{transform_indices = @transform_0, window_bounds = array<i64: 8, 10>}, {transform_indices = @transform_1, window_bounds = array<i64: 8, 10>}, {transform_indices = @transform_2, window_bounds = array<i64: 8, 10>}]} {
    %c0_i32 = arith.constant 0 : i32
    %0 = arith.cmpi eq, %arg1, %c0_i32 : i32
    %1 = arith.extui %0 : i1 to i32
    %c0_i32_0 = arith.constant 0 : i32
    %2 = arith.cmpi ne, %1, %c0_i32_0 : i32
    scf.if %2 {
      %cst_19 = arith.constant 0.000000e+00 : f32
      %45 = vector.broadcast %cst_19 : f32 to vector<8x10xf32>
      %c0_20 = arith.constant 0 : index
      %c0_21 = arith.constant 0 : index
      %46 = vector.load %arg4[%c0_20, %c0_21] : memref<8x10xf32, #tpu.memory_space<vmem>>, vector<8x10xf32>
      tpu.vector_store %arg4[%c0_20, %c0_21], %45 {strides = array<i32>} : memref<8x10xf32, #tpu.memory_space<vmem>>, vector<8x10xf32>,
    } else {
    }
    %c0 = arith.constant 0 : index
    %c0_1 = arith.constant 0 : index
    %3 = vector.load %arg2[%c0, %c0_1] : memref<8x10xf32, #tpu.memory_space<vmem>>, vector<8x10xf32>
    %c0_2 = arith.constant 0 : index
    %c0_3 = arith.constant 0 : index
    %4 = vector.load %arg3[%c0_2, %c0_3] : memref<8x10xf32, #tpu.memory_space<vmem>>, vector<8x10xf32>
    %cst = arith.constant 1.000000e+00 : f32
    %5 = vector.broadcast %cst : f32 to vector<8x10xf32>
    %6 = arith.cmpf oeq, %4, %5 : vector<8x10xf32>
    %7 = arith.extui %6 : vector<8x10xi1> to vector<8x10xi32>
    %8 = arith.sitofp %7 : vector<8x10xi32> to vector<8x10xf32>
    %cst_4 = arith.constant 0.000000e+00 : f32
    %9 = vector.broadcast %cst_4 : f32 to vector<8x10xf32>
    %10 = arith.cmpf oeq, %4, %9 : vector<8x10xf32>
    %11 = arith.extui %10 : vector<8x10xi1> to vector<8x10xi32>
    %12 = arith.sitofp %11 : vector<8x10xi32> to vector<8x10xf32>
    %cst_5 = arith.constant dense<0xFF800000> : vector<8xf32>
    %13 = vector.multi_reduction <maximumf>, %3, %cst_5 [1] : vector<8x10xf32> to vector<8xf32>
    %14 = vector.shape_cast %13 : vector<8xf32> to vector<8x1xf32>
    %15 = vector.broadcast %14 : vector<8x1xf32> to vector<8x10xf32>
    %16 = arith.subf %3, %15 : vector<8x10xf32>
    %17 = math.exp %16 : vector<8x10xf32>
    %cst_6 = arith.constant dense<0.000000e+00> : vector<8xf32>
    %18 = vector.multi_reduction <add>, %17, %cst_6 [1] : vector<8x10xf32> to vector<8xf32>
    %19 = vector.shape_cast %18 : vector<8xf32> to vector<8x1xf32>
    %20 = vector.broadcast %19 : vector<8x1xf32> to vector<8x10xf32>
    %21 = arith.divf %17, %20 : vector<8x10xf32>
    %22 = arith.mulf %3, %8 : vector<8x10xf32>
    %23 = arith.mulf %3, %12 : vector<8x10xf32>
    %cst_7 = arith.constant dense<0.000000e+00> : vector<10xf32>
    %24 = vector.multi_reduction <add>, %8, %cst_7 [0] : vector<8x10xf32> to vector<10xf32>
    %25 = vector.shape_cast %24 : vector<10xf32> to vector<1x10xf32>
    %cst_8 = arith.constant dense<0.000000e+00> : vector<10xf32>
    %26 = vector.multi_reduction <add>, %12, %cst_8 [0] : vector<8x10xf32> to vector<10xf32>
    %27 = vector.shape_cast %26 : vector<10xf32> to vector<1x10xf32>
    %cst_9 = arith.constant dense<0.000000e+00> : vector<10xf32>
    %28 = vector.multi_reduction <add>, %22, %cst_9 [0] : vector<8x10xf32> to vector<10xf32>
    %29 = vector.shape_cast %28 : vector<10xf32> to vector<1x10xf32>
    %30 = arith.mulf %3, %22 : vector<8x10xf32>
    %cst_10 = arith.constant dense<0.000000e+00> : vector<10xf32>
    %31 = vector.multi_reduction <add>, %30, %cst_10 [0] : vector<8x10xf32> to vector<10xf32>
    %32 = vector.shape_cast %31 : vector<10xf32> to vector<1x10xf32>
    %cst_11 = arith.constant dense<0.000000e+00> : vector<10xf32>
    %33 = vector.multi_reduction <add>, %23, %cst_11 [0] : vector<8x10xf32> to vector<10xf32>
    %34 = vector.shape_cast %33 : vector<10xf32> to vector<1x10xf32>
    %35 = arith.mulf %3, %23 : vector<8x10xf32>
    %cst_12 = arith.constant dense<0.000000e+00> : vector<10xf32>
    %36 = vector.multi_reduction <add>, %35, %cst_12 [0] : vector<8x10xf32> to vector<10xf32>
    %37 = vector.shape_cast %36 : vector<10xf32> to vector<1x10xf32>
    %cst_13 = arith.constant dense<0.000000e+00> : vector<10xf32>
    %38 = vector.multi_reduction <add>, %21, %cst_13 [0] : vector<8x10xf32> to vector<10xf32>
    %39 = vector.shape_cast %38 : vector<10xf32> to vector<1x10xf32>
    %cst_14 = arith.constant 0.000000e+00 : f32
    %40 = vector.broadcast %cst_14 : f32 to vector<1x10xf32>
    %41 = tpu.concatenate %25, %27, %29, %32, %34, %37, %39, %40 in 0 : vector<1x10xf32>, vector<1x10xf32>, vector<1x10xf32>, vector<1x10xf32>, vector<1x10xf32>, vector<1x10xf32>, vector<1x10xf32>, vector<1x10xf32> -> vector<8x10xf32>
    %c0_15 = arith.constant 0 : index
    %c0_16 = arith.constant 0 : index
    %42 = vector.load %arg4[%c0_15, %c0_16] : memref<8x10xf32, #tpu.memory_space<vmem>>, vector<8x10xf32>
    %43 = arith.addf %42, %41 : vector<8x10xf32>
    %c0_17 = arith.constant 0 : index
    %c0_18 = arith.constant 0 : index
    %44 = vector.load %arg4[%c0_17, %c0_18] : memref<8x10xf32, #tpu.memory_space<vmem>>, vector<8x10xf32>
    tpu.vector_store %arg4[%c0_17, %c0_18], %43 {strides = array<i32>} : memref<8x10xf32, #tpu.memory_space<vmem>>, vector<8x10xf32>,
    return
  }
  func.func @transform_0(%arg0: i32, %arg1: i32) -> (i32, i32) {
    %c1_i32 = arith.constant 1 : i32
    %0 = arith.muli %arg0, %c1_i32 : i32
    %1 = arith.addi %0, %arg1 : i32
    %c0_i32 = arith.constant 0 : i32
    %c0_i32_0 = arith.constant 0 : i32
    return %1, %c0_i32 : i32, i32
  }
  func.func @transform_1(%arg0: i32, %arg1: i32) -> (i32, i32) {
    %c1_i32 = arith.constant 1 : i32
    %0 = arith.muli %arg0, %c1_i32 : i32
    %1 = arith.addi %0, %arg1 : i32
    %c0_i32 = arith.constant 0 : i32
    %c0_i32_0 = arith.constant 0 : i32
    return %1, %c0_i32 : i32, i32
  }
  func.func @transform_2(%arg0: i32, %arg1: i32) -> (i32, i32) {
    %c0_i32 = arith.constant 0 : i32
    %c0_i32_0 = arith.constant 0 : i32
    return %arg0, %c0_i32 : i32, i32
  }
}

</mosaic_0001>

<llo_original>
// kernel: tpu_custom_call.1
$region0: #{tpu_custom_call.1}
  #allocation0 [shape = 'u32[]', space=smem, size = 0x4, offset = 0x4, fixed_abs, tag = 'smem constant byte address 0x4 - core index']
  #allocation1 [shape = 'u32[144,128]{1,0:T(1,128)}', space=vmem, size = 0x12000, scoped, tag = 'internal scratch']
  %s0 = inlined_call_operand.hbm [shape: f32[8,10], index: 0, kind: input, shape index: {}]
  %s1 = inlined_call_operand.hbm [shape: f32[8,10], index: 1, kind: input, shape index: {}]
  %s2 = inlined_call_operand.hbm [shape: f32[8,10], index: 2, kind: output, shape index: {}]
  %s3 = sld [smem:[#allocation0]]
  $region30: #{tpu_custom_call.1} parent=0
    _
  %s5 = ssub.s32 1, %s3
  %s6 = scalar_select 0, %s5, %s3
  $region1: #{tpu_custom_call.1} parent=0
    #allocation2 [shape = 'u8[4096]{0}', space=vmem, size = 0x1000, scoped, tag = 'input window, operand 0, single buffered']
    #allocation3 [shape = 's32[1]{0}', space=sflag, size = 0x4, scoped, tag = 'scoped memory for tpu_custom_call.1']
    #allocation4 [shape = 's32[1]{0}', space=sflag, size = 0x4, scoped, tag = 'scoped memory for tpu_custom_call.1']
    #allocation5 [shape = 'u8[4096]{0}', space=vmem, size = 0x1000, scoped, tag = 'input window, operand 1, single buffered']
    #allocation6 [shape = 's32[1]{0}', space=sflag, size = 0x4, scoped, tag = 'scoped memory for tpu_custom_call.1']
    #allocation7 [shape = 'u8[4096]{0}', space=vmem, size = 0x1000, scoped, tag = 'output window, operand 0, single buffered']
    %7 = vsyncpa [#allocation3], 0
    %8 = vsyncpa [#allocation6], 0
    %9 = vsyncpa [#allocation4], 0
    // Predicated region
    $region2: #{tpu_custom_call.1} parent=1 // pred_check
      _
    $region3: #{tpu_custom_call.1} parent=1 // pred_check_branch
      %11 = sbr.rel (0) target = $region5
    $region4: #{tpu_custom_call.1} parent=1 // pred_region
      %s12 = sadd.s32 0, 0
      %s14 = ssub.s32 128, 128
      %15 = vsyncadd [#allocation3], %s14
      %s16 = smul.addr %s12, 128
      %s17 = scalar_lea.hbm %s0, %s16
      %s19 = sshll.u32 [#allocation2], 4
      %s20 = int_to_ptr.vmem [resolvable:$true] %s19
      %22 = dma.hbm_to_vmem [thread:$0]  %s17, 128, %s20, [#allocation3]
    $region5: #{tpu_custom_call.1} parent=1 // pred_fallthru
      _
    // Predicated region
    $region6: #{tpu_custom_call.1} parent=1 // pred_check
      _
    $region7: #{tpu_custom_call.1} parent=1 // pred_check_branch
      %24 = sbr.rel (0) target = $region9
    $region8: #{tpu_custom_call.1} parent=1 // pred_region
      %s25 = sadd.s32 0, 0
      %s27 = ssub.s32 128, 128
      %28 = vsyncadd [#allocation6], %s27
      %s29 = smul.addr %s25, 128
      %s30 = scalar_lea.hbm %s1, %s29
      %s32 = sshll.u32 [#allocation5], 4
      %s33 = int_to_ptr.vmem [resolvable:$true] %s32
      %35 = dma.hbm_to_vmem [thread:$0]  %s30, 128, %s33, [#allocation6]
    $region9: #{tpu_custom_call.1} parent=1 // pred_fallthru
      _
    // Predicated region
    $region10: #{tpu_custom_call.1} parent=1 // pred_check
      _
    $region11: #{tpu_custom_call.1} parent=1 // pred_check_branch
      %37 = sbr.rel (0) target = $region13
    $region12: #{tpu_custom_call.1} parent=1 // pred_region
      %38 = dma.done [#allocation3], 128
    $region13: #{tpu_custom_call.1} parent=1 // pred_fallthru
      _
    // Predicated region
    $region14: #{tpu_custom_call.1} parent=1 // pred_check
      _
    $region15: #{tpu_custom_call.1} parent=1 // pred_check_branch
      %40 = sbr.rel (0) target = $region17
    $region16: #{tpu_custom_call.1} parent=1 // pred_region
      %41 = dma.done [#allocation6], 128
    $region17: #{tpu_custom_call.1} parent=1 // pred_fallthru
      _
    %s42 = sadd.s32 0, 0
    %s43 = sadd.s32 0, 0
    %p44 = scmp.eq.s32.totalorder 0, 0
    // Predicated region
    $region18: #{tpu_custom_call.1} parent=1 // pred_check
      %p45 = pneg %p44
    $region19: #{tpu_custom_call.1} parent=1 // pred_check_branch
      %47 = sbr.rel (%p45) target = $region21
    $region20: #{tpu_custom_call.1} parent=1 // pred_region
      %vm48 = vcmask 80896
      %49 = vst.msk [vmem:[#allocation7] sm:$0xff] %vm48, 0.0
    $region21: #{tpu_custom_call.1} parent=1 // pred_fallthru
      _
    %v50 = vld [vmem:[#allocation2] sm:$0xff]
    %v51 = vld [vmem:[#allocation5] sm:$0xff]
    %vm52 = vcmp.eq.f32.partialorder %v51, 1.0
    %v53 = vsel %vm52, 1, 0
    %v54 = vcvt.s32.f32 %v53
    %vm55 = vcmp.eq.f32.partialorder %v51, 0.0
    %v56 = vsel %vm55, 1, 0
    %v57 = vcvt.s32.f32 %v56
    %vm58 = vcmask 80896
    %v59 = vsel %vm58, %v50, -inf
    %60 = vmax.xlane.f32.xlu0 %v59
    %v61 = vpop.xlane.xlu0 %60
    %v62 = vsub.f32 %v50, %v61
    %v63 = vmul.f32 %v62, 1.442695
    %v64 = vpow.pop %v63
    %v65 = vsel %vm58, %v64, 0.0
    %66 = vadd.xlane.f32.xlu0 %v65
    %v67 = vpop.xlane.xlu0 %66
    %v68 = vrcp.pop %v67
    %v69 = vmul.f32 %v64, %v68
    %v70 = vmul.f32 %v50, %v54
    %v71 = vmul.f32 %v50, %v57
    %v72 = vsel %vm58, %v54, 0.0
    %v73 = vrot.slane %v72, 4
    %v74 = vadd.f32 %v72, %v73
    %v75 = vrot.slane %v74, 2
    %v76 = vadd.f32 %v74, %v75
    %v77 = vrot.slane %v76, 1
    %v78 = vadd.f32 %v76, %v77
    %v79 = vsel %vm58, %v57, 0.0
    %v80 = vrot.slane %v79, 4
    %v81 = vadd.f32 %v79, %v80
    %v82 = vrot.slane %v81, 2
    %v83 = vadd.f32 %v81, %v82
    %v84 = vrot.slane %v83, 1
    %v85 = vadd.f32 %v83, %v84
    %v86 = vsel %vm58, %v70, 0.0
    %v87 = vrot.slane %v86, 4
    %v88 = vadd.f32 %v86, %v87
    %v89 = vrot.slane %v88, 2
    %v90 = vadd.f32 %v88, %v89
    %v91 = vrot.slane %v90, 1
    %v92 = vadd.f32 %v90, %v91
    %v93 = vmul.f32 %v50, %v70
    %v94 = vsel %vm58, %v93, 0.0
    %v95 = vrot.slane %v94, 4
    %v96 = vadd.f32 %v94, %v95
    %v97 = vrot.slane %v96, 2
    %v98 = vadd.f32 %v96, %v97
    %v99 = vrot.slane %v98, 1
    %v100 = vadd.f32 %v98, %v99
    %v101 = vsel %vm58, %v71, 0.0
    %v102 = vrot.slane %v101, 4
    %v103 = vadd.f32 %v101, %v102
    %v104 = vrot.slane %v103, 2
    %v105 = vadd.f32 %v103, %v104
    %v106 = vrot.slane %v105, 1
    %v107 = vadd.f32 %v105, %v106
    %v108 = vmul.f32 %v50, %v71
    %v109 = vsel %vm58, %v108, 0.0
    %v110 = vrot.slane %v109, 4
    %v111 = vadd.f32 %v109, %v110
    %v112 = vrot.slane %v111, 2
    %v113 = vadd.f32 %v111, %v112
    %v114 = vrot.slane %v113, 1
    %v115 = vadd.f32 %v113, %v114
    %v116 = vsel %vm58, %v69, 0.0
    %v117 = vrot.slane %v116, 4
    %v118 = vadd.f32 %v116, %v117
    %v119 = vrot.slane %v118, 2
    %v120 = vadd.f32 %v118, %v119
    %v121 = vrot.slane %v120, 1
    %v122 = vadd.f32 %v120, %v121
    %vm123 = vcmask 1040384
    %v124 = vsel %vm123, %v78, %v85
    %vm125 = vcmask 1041408
    %v126 = vsel %vm125, %v124, %v92
    %vm127 = vcmask 1042432
    %v128 = vsel %vm127, %v126, %v100
    %vm129 = vcmask 1043456
    %v130 = vsel %vm129, %v128, %v107
    %vm131 = vcmask 1044480
    %v132 = vsel %vm131, %v130, %v115
    %vm133 = vcmask 1045504
    %v134 = vsel %vm133, %v132, %v122
    %vm135 = vcmask 1046528
    %v136 = vsel %vm135, %v134, 0.0
    %v137 = vld [vmem:[#allocation7] sm:$0xff]
    %v138 = vadd.f32 %v137, %v136
    %139 = vst.msk [vmem:[#allocation7] sm:$0xff] %vm58, %v138
    // Predicated region
    $region22: #{tpu_custom_call.1} parent=1 // pred_check
      _
    $region23: #{tpu_custom_call.1} parent=1 // pred_check_branch
      %141 = sbr.rel (0) target = $region25
    $region24: #{tpu_custom_call.1} parent=1 // pred_region
      %s143 = ssub.s32 128, 128
      %144 = vsyncadd [#allocation4], %s143
      %s146 = sshll.u32 [#allocation7], 4
      %s147 = int_to_ptr.vmem [resolvable:$true] %s146
      %149 = dma.vmem_to_hbm [thread:$0]  %s147, 128, %s2, [#allocation4]
    $region25: #{tpu_custom_call.1} parent=1 // pred_fallthru
      _
    // Predicated region
    $region26: #{tpu_custom_call.1} parent=1 // pred_check
      _
    $region27: #{tpu_custom_call.1} parent=1 // pred_check_branch
      %151 = sbr.rel (0) target = $region29
    $region28: #{tpu_custom_call.1} parent=1 // pred_region
      %152 = dma.done [#allocation4], 128
    $region29: #{tpu_custom_call.1} parent=1 // pred_fallthru
      _
    %153 = vsyncpa [#allocation3], 1
    %154 = vsyncpa [#allocation6], 1
    %155 = vsyncpa [#allocation4], 1

</llo_original>
